<compile_context>
chip_gen: v7x
topology: tpu7x:2x2x1
jax: 0.10.0
libtpu: 0.0.40
codegen_flags: <defaults>
</compile_context>

<pallas_src>
import math

import jax
import jax.numpy as jnp
from jax.experimental import pallas as pl
from jax.experimental.pallas import tpu as pltpu

ILN = 6    # input features
HLN = 20   # hidden units
OLN = 3    # output features


def _round_up(v, m):
    return ((v + m - 1) // m) * m


def mlp_kernel(x_ref, w1_ref, b1_ref, w2_ref, b2_ref, out_ref):
    """fc1 -> sigmoid -> fc2 for one batch tile."""
    x = x_ref[...]                                                   # (tb, ILN)
    h = jnp.dot(x, w1_ref[...],
                preferred_element_type=jnp.float32) + b1_ref[...]    # (tb, HLN)
    # sigmoid(h) = 1 / (1 + exp(-h)): exp and the reciprocal estimate land on
    # the EUP slot; one Newton step on the idle VPU restores f32 accuracy.
    hc = jnp.clip(h, -30.0, 30.0)            # keep exp finite for the Newton step
    d = 1.0 + jnp.exp(-hc)
    r = pl.reciprocal(d, approx=True)
    s = r * (2.0 - d * r)                    # Newton refinement -> ~f32 exact
    y = jnp.dot(s, w2_ref[...],
                preferred_element_type=jnp.float32) + b2_ref[...]    # (tb, OLN)
    out_ref[...] = y.astype(out_ref.dtype)


def net_forward(x, w1, b1, w2, b2, *, tb=8192, vmem_limit_bytes=None):
    """Fused MLP forward.

    x: (B, ILN) f32.  Weights stored (in, out): w1 (ILN,HLN), b1 (1,HLN),
    w2 (HLN,OLN), b2 (1,OLN).  Returns (B, OLN) f32.
    """
    B = x.shape[0]

    # --- batch-tile selection --------------------------------------------
    # Multiple of 8 sublanes, never (much) larger than the batch itself.
    tb = _round_up(max(1, min(tb, B)), 8)
    # If the whole batch would fit in one grid step, split it in two so the
    # "parallel" axis can shard across v7x's 2 TensorCores.
    if B > 16 and pl.cdiv(B, tb) == 1:
        tb = _round_up(pl.cdiv(B, 2), 8)

    grid = (pl.cdiv(B, tb),)   # ragged last block handled by Pallas masking

    # --- VMEM budget -------------------------------------------------------
    # x and out blocks are lane-padded to 128 f32 lanes in VMEM (512 B/row
    # each) and double-buffered; weights are tiny and resident.  Raise the
    # scoped-VMEM limit only when v5e's 16 MiB default could be tight.
    if vmem_limit_bytes is None and tb > 4096:
        vmem_limit_bytes = 4 * tb * 512 + (4 << 20)

    cp_kwargs = dict(dimension_semantics=("parallel",))
    if vmem_limit_bytes is not None:
        cp_kwargs["vmem_limit_bytes"] = int(vmem_limit_bytes)

    return pl.pallas_call(
        mlp_kernel,
        out_shape=jax.ShapeDtypeStruct((B, OLN), jnp.float32),
        grid_spec=pltpu.PrefetchScalarGridSpec(
            num_scalar_prefetch=0,
            grid=grid,
            in_specs=[
                pl.BlockSpec((tb, ILN), lambda i: (i, 0)),     # x: pipelined per tile
                pl.BlockSpec((ILN, HLN), lambda i: (0, 0)),    # w1: VMEM-resident
                pl.BlockSpec((1, HLN), lambda i: (0, 0)),      # b1: VMEM-resident
                pl.BlockSpec((HLN, OLN), lambda i: (0, 0)),    # w2: VMEM-resident
                pl.BlockSpec((1, OLN), lambda i: (0, 0)),      # b2: VMEM-resident
            ],
            out_specs=pl.BlockSpec((tb, OLN), lambda i: (i, 0)),
        ),
        compiler_params=pltpu.CompilerParams(**cp_kwargs),
    )(x, w1, b1, w2, b2)


def init_params(key):
    """PyTorch nn.Linear default init: U(-1/sqrt(fan_in), +1/sqrt(fan_in))."""
    k1, k2, k3, k4 = jax.random.split(key, 4)
    bound1 = 1.0 / math.sqrt(ILN)
    bound2 = 1.0 / math.sqrt(HLN)
    w1 = jax.random.uniform(k1, (ILN, HLN), jnp.float32, -bound1, bound1)
    b1 = jax.random.uniform(k2, (1, HLN), jnp.float32, -bound1, bound1)
    w2 = jax.random.uniform(k3, (HLN, OLN), jnp.float32, -bound2, bound2)
    b2 = jax.random.uniform(k4, (1, OLN), jnp.float32, -bound2, bound2)
    return w1, b1, w2, b2


def reference_forward(x, w1, b1, w2, b2):
    """Pure-JAX reference matching the PyTorch forward."""
    h = jax.nn.sigmoid(x @ w1 + b1)
    return h @ w2 + b2


if __name__ == "__main__":
    key = jax.random.PRNGKey(0)
    kx1, kx2, kx3, kp = jax.random.split(key, 4)
    w1, b1, w2, b2 = init_params(kp)

    # The in-kernel sigmoid uses the EUP approx reciprocal + one Newton step
    # (~1e-6 relative accuracy); 1e-4 tolerance leaves margin.
    ATOL = RTOL = 1e-4

    # Case 1: small aligned batch, single grid step.
    x1 = jax.random.normal(kx1, (8, ILN), jnp.float32)
    out1 = jax.block_until_ready(net_forward(x1, w1, b1, w2, b2))
    assert out1.shape == (8, OLN), out1.shape
    assert jnp.allclose(out1, reference_forward(x1, w1, b1, w2, b2),
                        atol=ATOL, rtol=RTOL), "mismatch vs reference (B=8)"

    # Case 2: ragged batch, explicit small tile -> multi-step grid with a
    # partial last block and VMEM-resident weights.
    x2 = jax.random.normal(kx2, (37, ILN), jnp.float32)
    out2 = jax.block_until_ready(net_forward(x2, w1, b1, w2, b2, tb=16))
    assert out2.shape == (37, OLN), out2.shape
    assert jnp.allclose(out2, reference_forward(x2, w1, b1, w2, b2),
                        atol=ATOL, rtol=RTOL), "mismatch vs reference (B=37, tb=16)"

    # Case 3: default tile -> exercises the ">= 2 grid steps" clamp (tb=24,
    # grid=2) and ragged-edge handling without any padded copy of x.
    x3 = jax.random.normal(kx3, (37, ILN), jnp.float32)
    out3 = jax.block_until_ready(net_forward(x3, w1, b1, w2, b2))
    assert out3.shape == (37, OLN), out3.shape
    assert jnp.allclose(out3, reference_forward(x3, w1, b1, w2, b2),
                        atol=ATOL, rtol=RTOL), "mismatch vs reference (B=37, default tb)"

    print("KERNEL_OK")
</pallas_src>

<mosaic_0001>
module attributes {stable_mosaic.version = 11 : i64} {
  func.func @mlp_kernel(%arg0: i32, %arg1: memref<8x6xf32, #tpu.memory_space<vmem>>, %arg2: memref<6x20xf32, #tpu.memory_space<vmem>>, %arg3: memref<1x20xf32, #tpu.memory_space<vmem>>, %arg4: memref<20x3xf32, #tpu.memory_space<vmem>>, %arg5: memref<1x3xf32, #tpu.memory_space<vmem>>, %arg6: memref<8x3xf32, #tpu.memory_space<vmem>>) attributes {dimension_semantics = [#tpu.dimension_semantics<parallel>], iteration_bounds = array<i64: 1>, scalar_prefetch = 0 : i64, scratch_operands = 0 : i64, tpu.core_type = #tpu.core_type<tc>, window_params = [{transform_indices = @transform_0, window_bounds = array<i64: 8, 6>}, {pipeline_mode = #tpu.pipeline_mode<synchronous>, transform_indices = @transform_1, window_bounds = array<i64: 6, 20>}, {pipeline_mode = #tpu.pipeline_mode<synchronous>, transform_indices = @transform_2, window_bounds = array<i64: 1, 20>}, {pipeline_mode = #tpu.pipeline_mode<synchronous>, transform_indices = @transform_3, window_bounds = array<i64: 20, 3>}, {pipeline_mode = #tpu.pipeline_mode<synchronous>, transform_indices = @transform_4, window_bounds = array<i64: 1, 3>}, {transform_indices = @transform_5, window_bounds = array<i64: 8, 3>}]} {
    %c0 = arith.constant 0 : index
    %c0_0 = arith.constant 0 : index
    %0 = vector.load %arg1[%c0, %c0_0] : memref<8x6xf32, #tpu.memory_space<vmem>>, vector<8x6xf32>
    %c0_1 = arith.constant 0 : index
    %c0_2 = arith.constant 0 : index
    %1 = vector.load %arg2[%c0_1, %c0_2] : memref<6x20xf32, #tpu.memory_space<vmem>>, vector<6x20xf32>
    %cst = arith.constant dense<0.000000e+00> : vector<8x20xf32>
    %2 = tpu.matmul %0, %1, %cst {dimension_numbers = #tpu.dot_dimension_numbers<[1], [0], [0], [1], [0, 0, 1, 1], [], []>} : vector<8x6xf32>, vector<6x20xf32>, vector<8x20xf32> -> vector<8x20xf32>
    %c0_3 = arith.constant 0 : index
    %c0_4 = arith.constant 0 : index
    %3 = vector.load %arg3[%c0_3, %c0_4] : memref<1x20xf32, #tpu.memory_space<vmem>>, vector<1x20xf32>
    %4 = vector.broadcast %3 : vector<1x20xf32> to vector<8x20xf32>
    %5 = arith.addf %2, %4 : vector<8x20xf32>
    %cst_5 = arith.constant -3.000000e+01 : f32
    %cst_6 = arith.constant 3.000000e+01 : f32
    %6 = vector.broadcast %cst_5 : f32 to vector<8x20xf32>
    %7 = arith.maximumf %6, %5 : vector<8x20xf32>
    %8 = vector.broadcast %cst_6 : f32 to vector<8x20xf32>
    %9 = arith.minimumf %8, %7 : vector<8x20xf32>
    %cst_7 = arith.constant 0.000000e+00 : f32
    %10 = vector.broadcast %cst_7 : f32 to vector<8x20xf32>
    %11 = arith.subf %10, %9 : vector<8x20xf32>
    %12 = math.exp %11 : vector<8x20xf32>
    %cst_8 = arith.constant 1.000000e+00 : f32
    %13 = vector.broadcast %cst_8 : f32 to vector<8x20xf32>
    %14 = arith.addf %13, %12 : vector<8x20xf32>
    %15 = tpu.reciprocal %14 {approx = true} : vector<8x20xf32> -> vector<8x20xf32>
    %16 = arith.mulf %14, %15 : vector<8x20xf32>
    %cst_9 = arith.constant 2.000000e+00 : f32
    %17 = vector.broadcast %cst_9 : f32 to vector<8x20xf32>
    %18 = arith.subf %17, %16 : vector<8x20xf32>
    %19 = arith.mulf %15, %18 : vector<8x20xf32>
    %c0_10 = arith.constant 0 : index
    %c0_11 = arith.constant 0 : index
    %20 = vector.load %arg4[%c0_10, %c0_11] : memref<20x3xf32, #tpu.memory_space<vmem>>, vector<20x3xf32>
    %cst_12 = arith.constant dense<0.000000e+00> : vector<8x3xf32>
    %21 = tpu.matmul %19, %20, %cst_12 {dimension_numbers = #tpu.dot_dimension_numbers<[1], [0], [0], [1], [0, 0, 1, 1], [], []>} : vector<8x20xf32>, vector<20x3xf32>, vector<8x3xf32> -> vector<8x3xf32>
    %c0_13 = arith.constant 0 : index
    %c0_14 = arith.constant 0 : index
    %22 = vector.load %arg5[%c0_13, %c0_14] : memref<1x3xf32, #tpu.memory_space<vmem>>, vector<1x3xf32>
    %23 = vector.broadcast %22 : vector<1x3xf32> to vector<8x3xf32>
    %24 = arith.addf %21, %23 : vector<8x3xf32>
    %c0_15 = arith.constant 0 : index
    %c0_16 = arith.constant 0 : index
    %25 = vector.load %arg6[%c0_15, %c0_16] : memref<8x3xf32, #tpu.memory_space<vmem>>, vector<8x3xf32>
    tpu.vector_store %arg6[%c0_15, %c0_16], %24 {strides = array<i32>} : memref<8x3xf32, #tpu.memory_space<vmem>>, vector<8x3xf32>,
    return
  }
  func.func @transform_0(%arg0: i32) -> (i32, i32) {
    %c0_i32 = arith.constant 0 : i32
    %c0_i32_0 = arith.constant 0 : i32
    return %arg0, %c0_i32 : i32, i32
  }
  func.func @transform_1(%arg0: i32) -> (i32, i32) {
    %c0_i32 = arith.constant 0 : i32
    %c0_i32_0 = arith.constant 0 : i32
    %c0_i32_1 = arith.constant 0 : i32
    return %c0_i32, %c0_i32_0 : i32, i32
  }
  func.func @transform_2(%arg0: i32) -> (i32, i32) {
    %c0_i32 = arith.constant 0 : i32
    %c0_i32_0 = arith.constant 0 : i32
    %c0_i32_1 = arith.constant 0 : i32
    return %c0_i32, %c0_i32_0 : i32, i32
  }
  func.func @transform_3(%arg0: i32) -> (i32, i32) {
    %c0_i32 = arith.constant 0 : i32
    %c0_i32_0 = arith.constant 0 : i32
    %c0_i32_1 = arith.constant 0 : i32
    return %c0_i32, %c0_i32_0 : i32, i32
  }
  func.func @transform_4(%arg0: i32) -> (i32, i32) {
    %c0_i32 = arith.constant 0 : i32
    %c0_i32_0 = arith.constant 0 : i32
    %c0_i32_1 = arith.constant 0 : i32
    return %c0_i32, %c0_i32_0 : i32, i32
  }
  func.func @transform_5(%arg0: i32) -> (i32, i32) {
    %c0_i32 = arith.constant 0 : i32
    %c0_i32_0 = arith.constant 0 : i32
    return %arg0, %c0_i32 : i32, i32
  }
}

</mosaic_0001>

<llo_original>
// kernel: tpu_custom_call.1
$region0: #{tpu_custom_call.1}
  #allocation0 [shape = 'u32[]', space=smem, size = 0x4, offset = 0x4, fixed_abs, tag = 'smem constant byte address 0x4 - core index']
  #allocation1 [shape = 'u32[144,128]{1,0:T(1,128)}', space=vmem, size = 0x12000, scoped, tag = 'internal scratch']
  %s0 = inlined_call_operand.vmem [shape: f32[8,6], index: 0, kind: input, shape index: {}]
  %s1 = inlined_call_operand.vmem [shape: f32[6,20], index: 1, kind: input, shape index: {}]
  %s2 = inlined_call_operand.vmem [shape: f32[1,20], index: 2, kind: input, shape index: {}]
  %s3 = inlined_call_operand.vmem [shape: f32[20,3], index: 3, kind: input, shape index: {}]
  %s4 = inlined_call_operand.vmem [shape: f32[1,3], index: 4, kind: input, shape index: {}]
  %s5 = inlined_call_operand.vmem [shape: f32[8,3], index: 5, kind: output, shape index: {}]
  %s6 = sld [smem:[#allocation0]]
  $region30: #{tpu_custom_call.1} parent=0
    _
  %s8 = ssub.s32 1, %s6
  %s9 = scalar_select 0, %s8, %s6
  // Predicated region
  $region2: #{tpu_custom_call.1} parent=0 // pred_check
    _
  $region3: #{tpu_custom_call.1} parent=0 // pred_check_branch
    %11 = sbr.rel (0) target = $region5
  $region4: #{tpu_custom_call.1} parent=0 // pred_region
    _
  $region5: #{tpu_custom_call.1} parent=0 // pred_fallthru
    _
  // Predicated region
  $region6: #{tpu_custom_call.1} parent=0 // pred_check
    _
  $region7: #{tpu_custom_call.1} parent=0 // pred_check_branch
    %13 = sbr.rel (0) target = $region9
  $region8: #{tpu_custom_call.1} parent=0 // pred_region
    _
  $region9: #{tpu_custom_call.1} parent=0 // pred_fallthru
    _
  // Predicated region
  $region10: #{tpu_custom_call.1} parent=0 // pred_check
    _
  $region11: #{tpu_custom_call.1} parent=0 // pred_check_branch
    %15 = sbr.rel (0) target = $region13
  $region12: #{tpu_custom_call.1} parent=0 // pred_region
    _
  $region13: #{tpu_custom_call.1} parent=0 // pred_fallthru
    _
  // Predicated region
  $region14: #{tpu_custom_call.1} parent=0 // pred_check
    _
  $region15: #{tpu_custom_call.1} parent=0 // pred_check_branch
    %17 = sbr.rel (0) target = $region17
  $region16: #{tpu_custom_call.1} parent=0 // pred_region
    _
  $region17: #{tpu_custom_call.1} parent=0 // pred_fallthru
    _
  // Predicated region
  $region18: #{tpu_custom_call.1} parent=0 // pred_check
    _
  $region19: #{tpu_custom_call.1} parent=0 // pred_check_branch
    %19 = sbr.rel (0) target = $region21
  $region20: #{tpu_custom_call.1} parent=0 // pred_region
    _
  $region21: #{tpu_custom_call.1} parent=0 // pred_fallthru
    _
  %v20 = vld [vmem:[%s0] sm:$0xff]
  %v21 = vld [vmem:[%s1] sm:$0x3f]
  %v22 = vld [vmem:[%s2] sm:$0x1]
  %v24 = vlaneseq
  %v25 = vshrl.u32 %v24, 7
  %v26 = vsub.s32 0, %v25
  %v27 = vrot.slane %v22, %v26
  %vm29 = vcmask 48128
  %v31 = vsel %vm29, %v20, 0
  %vm33 = vcmask 1045504
  %v35 = vsel %vm33, %v21, 0
  %37 = vmatprep.subr.mxu0 0.0
  %38 = vmatpush1.msra.mxu0 %v35
  %39 = vmatprep.subr.mxu0 0.0
  %40 = vmatpush1.msra.mxu0 0.0
  %41 = vmatprep.subr.mxu0 0.0
  %42 = vmatpush1.msra.mxu0 0.0
  %43 = vmatprep.subr.mxu0 0.0
  %44 = vmatpush1.msra.mxu0 0.0
  %45 = vmatprep.subr.mxu0 0.0
  %46 = vmatpush1.msra.mxu0 0.0
  %47 = vmatprep.subr.mxu0 0.0
  %48 = vmatpush1.msra.mxu0 0.0
  %49 = vmatprep.subr.mxu0 0.0
  %50 = vmatpush1.msra.mxu0 0.0
  %51 = vmatprep.subr.mxu0 0.0
  %52 = vmatpush1.msra.mxu0 0.0
  %53 = vmatprep.subr.mxu0 0.0
  %54 = vmatpush1.msra.mxu0 0.0
  %55 = vmatprep.subr.mxu0 0.0
  %56 = vmatpush1.msra.mxu0 0.0
  %57 = vmatprep.subr.mxu0 0.0
  %58 = vmatpush1.msra.mxu0 0.0
  %59 = vmatprep.subr.mxu0 0.0
  %60 = vmatpush1.msra.mxu0 0.0
  %61 = vmatprep.subr.mxu0 0.0
  %62 = vmatpush1.msra.mxu0 0.0
  %63 = vmatprep.subr.mxu0 0.0
  %64 = vmatpush1.msra.mxu0 0.0
  %65 = vmatprep.subr.mxu0 0.0
  %66 = vmatpush1.msra.mxu0 0.0
  %67 = vmatprep.subr.mxu0 0.0
  %68 = vmatpush1.msra.mxu0 0.0
  %69 = vmatprep.subr.mxu0 0.0
  %70 = vmatpush1.msra.mxu0 0.0
  %71 = vmatprep.subr.mxu0 0.0
  %72 = vmatpush1.msra.mxu0 0.0
  %73 = vmatprep.subr.mxu0 0.0
  %74 = vmatpush1.msra.mxu0 0.0
  %75 = vmatprep.subr.mxu0 0.0
  %76 = vmatpush1.msra.mxu0 0.0
  %77 = vmatprep.subr.mxu0 0.0
  %78 = vmatpush1.msra.mxu0 0.0
  %79 = vmatprep.subr.mxu0 0.0
  %80 = vmatpush1.msra.mxu0 0.0
  %81 = vmatprep.subr.mxu0 0.0
  %82 = vmatpush1.msra.mxu0 0.0
  %83 = vmatprep.subr.mxu0 0.0
  %84 = vmatpush1.msra.mxu0 0.0
  %85 = vmatprep.subr.mxu0 0.0
  %86 = vmatpush1.msra.mxu0 0.0
  %87 = vmatprep.subr.mxu0 0.0
  %88 = vmatpush1.msra.mxu0 0.0
  %89 = vmatprep.subr.mxu0 0.0
  %90 = vmatpush1.msra.mxu0 0.0
  %91 = vmatprep.subr.mxu0 0.0
  %92 = vmatpush1.msra.mxu0 0.0
  %93 = vmatprep.subr.mxu0 0.0
  %94 = vmatpush1.msra.mxu0 0.0
  %95 = vmatprep.subr.mxu0 0.0
  %96 = vmatpush1.msra.mxu0 0.0
  %97 = vmatprep.subr.mxu0 0.0
  %98 = vmatpush1.msra.mxu0 0.0
  %99 = vmatprep.subr.mxu0 0.0
  %100 = vmatpush1.msra.mxu0 0.0
  %101 = vmatprep.mubr.f32.mxu0 0.0
  %102 = vmatmul.mubr.f32.gmra.mrb[0].mxu0 %v31
  %v103 = vpop.f32.mrb[0].mxu0
  %v104 = vadd.f32 %v27, %v103
  %v105 = vpop.f32.mrb[0].mxu0
  %106 = vdwg.mxu0
  %v107 = vmax.f32 %v104, -30.0
  %v108 = vmin.f32 %v107, 30.0
  %v109 = vsub.f32 0.0, %v108
  %v110 = vmul.f32 %v109, 1.442695
  %v111 = vpow.pop %v110
  %v112 = vadd.f32 %v111, 1.0
  %v113 = vrcp.pop %v112
  %v114 = vmul.f32 %v112, %v113
  %v115 = vsub.f32 2.0, %v114
  %v116 = vmul.f32 %v113, %v115
  %v117 = vld [vmem:[%s3] sm:$0xff]
  %v118 = vld [vmem:[%s3 + $0x8] sm:$0xff]
  %v119 = vld [vmem:[%s3 + $0x10] sm:$0xf]
  %v120 = vld [vmem:[%s4] sm:$0x1]
  %v122 = vlaneseq
  %v123 = vshrl.u32 %v122, 7
  %v124 = vsub.s32 0, %v123
  %v125 = vrot.slane %v120, %v124
  %vm127 = vcmask 162816
  %v129 = vsel %vm127, %v116, 0
  %vm131 = vcmask 1043456
  %v133 = vsel %vm131, %v119, 0
  %135 = vmatprep.subr.mxu0 0.0
  %136 = vmatpush1.msra.mxu0 %v117
  %137 = vmatprep.subr.mxu0 0.0
  %138 = vmatpush1.msra.mxu0 %v118
  %139 = vmatprep.subr.mxu0 0.0
  %140 = vmatpush1.msra.mxu0 %v133
  %141 = vmatprep.subr.mxu0 0.0
  %142 = vmatpush1.msra.mxu0 0.0
  %143 = vmatprep.subr.mxu0 0.0
  %144 = vmatpush1.msra.mxu0 0.0
  %145 = vmatprep.subr.mxu0 0.0
  %146 = vmatpush1.msra.mxu0 0.0
  %147 = vmatprep.subr.mxu0 0.0
  %148 = vmatpush1.msra.mxu0 0.0
  %149 = vmatprep.subr.mxu0 0.0
  %150 = vmatpush1.msra.mxu0 0.0
  %151 = vmatprep.subr.mxu0 0.0
  %152 = vmatpush1.msra.mxu0 0.0
  %153 = vmatprep.subr.mxu0 0.0
  %154 = vmatpush1.msra.mxu0 0.0
  %155 = vmatprep.subr.mxu0 0.0
  %156 = vmatpush1.msra.mxu0 0.0
  %157 = vmatprep.subr.mxu0 0.0
  %158 = vmatpush1.msra.mxu0 0.0
  %159 = vmatprep.subr.mxu0 0.0
  %160 = vmatpush1.msra.mxu0 0.0
  %161 = vmatprep.subr.mxu0 0.0
  %162 = vmatpush1.msra.mxu0 0.0
  %163 = vmatprep.subr.mxu0 0.0
  %164 = vmatpush1.msra.mxu0 0.0
  %165 = vmatprep.subr.mxu0 0.0
  %166 = vmatpush1.msra.mxu0 0.0
  %167 = vmatprep.subr.mxu0 0.0
  %168 = vmatpush1.msra.mxu0 0.0
  %169 = vmatprep.subr.mxu0 0.0
  %170 = vmatpush1.msra.mxu0 0.0
  %171 = vmatprep.subr.mxu0 0.0
  %172 = vmatpush1.msra.mxu0 0.0
  %173 = vmatprep.subr.mxu0 0.0
  %174 = vmatpush1.msra.mxu0 0.0
  %175 = vmatprep.subr.mxu0 0.0
  %176 = vmatpush1.msra.mxu0 0.0
  %177 = vmatprep.subr.mxu0 0.0
  %178 = vmatpush1.msra.mxu0 0.0
  %179 = vmatprep.subr.mxu0 0.0
  %180 = vmatpush1.msra.mxu0 0.0
  %181 = vmatprep.subr.mxu0 0.0
  %182 = vmatpush1.msra.mxu0 0.0
  %183 = vmatprep.subr.mxu0 0.0
  %184 = vmatpush1.msra.mxu0 0.0
  %185 = vmatprep.subr.mxu0 0.0
  %186 = vmatpush1.msra.mxu0 0.0
  %187 = vmatprep.subr.mxu0 0.0
  %188 = vmatpush1.msra.mxu0 0.0
  %189 = vmatprep.subr.mxu0 0.0
  %190 = vmatpush1.msra.mxu0 0.0
  %191 = vmatprep.subr.mxu0 0.0
  %192 = vmatpush1.msra.mxu0 0.0
  %193 = vmatprep.subr.mxu0 0.0
  %194 = vmatpush1.msra.mxu0 0.0
  %195 = vmatprep.subr.mxu0 0.0
  %196 = vmatpush1.msra.mxu0 0.0
  %197 = vmatprep.subr.mxu0 0.0
  %198 = vmatpush1.msra.mxu0 0.0
  %199 = vmatprep.mubr.f32.mxu0 0.0
  %200 = vmatmul.mubr.f32.gmra.mrb[0].mxu0 %v129
  %v201 = vpop.f32.mrb[0].mxu0
  %v202 = vadd.f32 %v125, %v201
  %v203 = vpop.f32.mrb[0].mxu0
  %204 = vdwg.mxu0
  %vm205 = vcmask 23552
  %206 = vst.msk [vmem:[%s5] sm:$0xff] %vm205, %v202
  // Predicated region
  $region22: #{tpu_custom_call.1} parent=0 // pred_check
    _
  $region23: #{tpu_custom_call.1} parent=0 // pred_check_branch
    %208 = sbr.rel (0) target = $region25
  $region24: #{tpu_custom_call.1} parent=0 // pred_region
    _
  $region25: #{tpu_custom_call.1} parent=0 // pred_fallthru
    _
  // Predicated region
  $region26: #{tpu_custom_call.1} parent=0 // pred_check
    _
  $region27: #{tpu_custom_call.1} parent=0 // pred_check_branch
    %210 = sbr.rel (0) target = $region29
  $region28: #{tpu_custom_call.1} parent=0 // pred_region
    _
  $region29: #{tpu_custom_call.1} parent=0 // pred_fallthru
    _

</llo_original>
